<compile_context>
chip_gen: v6e
topology: v6e:2x2x1
jax: 0.10.0
libtpu: 0.0.40
codegen_flags: <defaults>
</compile_context>

<pallas_src>
import jax
import jax.numpy as jnp
from jax.experimental import pallas as pl
from jax.experimental.pallas import tpu as pltpu


def _round_up(x, m):
    return ((x + m - 1) // m) * m


# ---------------------------------------------------------------------------
# Pass 1: tiled matmul + bias + per-tile max
# ---------------------------------------------------------------------------
def _matmul_max_kernel(x_ref, w_ref, b_ref, y_ref, pmax_ref):
    """One (m, n, k) grid step: accumulate x_tile @ w_tile into the resident f32
    output block; on the last k step add the bias and emit the tile max."""
    k = pl.program_id(2)                      # top-level only (interpret-safe)
    k_last = pl.num_programs(2) - 1

    @pl.when(k == 0)
    def _init():
        y_ref[...] = jnp.zeros_like(y_ref)

    # bf16 x bf16 -> f32 on the MXU (or f32 x f32 if compute_dtype=float32).
    y_ref[...] += jax.lax.dot_general(
        x_ref[...], w_ref[...],
        dimension_numbers=(((1,), (0,)), ((), ())),
        preferred_element_type=jnp.float32,
    )

    @pl.when(k == k_last)
    def _finalize():
        y = y_ref[...] + b_ref[...]           # (tm, tn) + (1, tn)
        y_ref[...] = y
        # Broadcast the tile max over a full (8, 128) block -> unmasked stores.
        # No masking needed: padded rows/cols are replicas of real rows/cols.
        pmax_ref[...] = jnp.full(pmax_ref.shape, jnp.max(y), jnp.float32)


# ---------------------------------------------------------------------------
# Pass 2: closed-form spiking gate (exactly reproduces the 10-step loop)
# ---------------------------------------------------------------------------
def _make_spike_gate_kernel(n_steps, chunk, unroll):
    def kernel(thr_ref, y_ref, o_ref):
        thr = thr_ref[0, 0]
        tm, tn = y_ref.shape                               # static block shape
        # Hoist the threshold broadcast once (JAX does not CSE broadcast_in_dim).
        thr_b = jnp.full((chunk, tn), thr, dtype=jnp.float32)

        def body(c, carry):
            rows = pl.ds(c * chunk, chunk)
            v = y_ref[rows, :]                             # y_orig chunk
            # y_n iterate with the SAME f32 rounding as the reference loop:
            #   y_1 = v ; y_{i+1} = v + 0.5 * y_i   (pre-first-spike recursion)
            y = v
            for _ in range(n_steps - 1):
                y = v + y * 0.5
            # gate = 1 iff the recursion ever crossed the threshold:
            #   max_n y_n = v        for v < 0   (decreasing sequence)
            #   max_n y_n = y_{10}   for v >= 0  (increasing sequence)
            gate = jnp.logical_or(v >= thr_b, y >= thr_b)
            o_ref[rows, :] = jnp.where(gate, v, 0.0)       # y_orig * {0,1}
            return carry

        jax.lax.fori_loop(0, tm // chunk, body, 0, unroll=unroll)

    return kernel


# ---------------------------------------------------------------------------
# Wrapper
# ---------------------------------------------------------------------------
def spikenet_forward(x, w, b, *, compute_dtype=jnp.bfloat16):
    """x: (B, IN) f32, w: (OUT, IN) f32 (PyTorch layout), b: (OUT,) f32.

    compute_dtype=bf16 is the MXU fast path on every TPU generation (f32
    accumulation is kept in-kernel); pass jnp.float32 for bit-level parity with
    a pure-f32 reference.
    """
    B, IN = x.shape
    OUT, IN_w = w.shape
    assert IN_w == IN and B >= 1 and OUT >= 1 and IN >= 1

    # --- tile selection (MXU / lane friendly; tiny problems -> one tile) ---
    tm = min(512, _round_up(B, 8))
    tn = min(512, _round_up(OUT, 128))
    tk = min(512, _round_up(IN, 128))
    Bp, OUTp, INp = _round_up(B, tm), _round_up(OUT, tn), _round_up(IN, tk)
    Mt, Nt, Kt = Bp // tm, OUTp // tn, INp // tk

    # --- pad by replication (rows of x, output channels of W/b) so the global
    #     max is unchanged and no in-kernel masking is needed; zero-pad IN
    #     (zeros contribute nothing to the dot).  In production the weight/bias
    #     would be padded / transposed / bf16-cast once at init time. ---
    xf = x.astype(jnp.float32)
    wf = w.astype(jnp.float32)
    bf = b.astype(jnp.float32)
    if Bp > B:
        xf = jnp.concatenate([xf, jnp.broadcast_to(xf[:1], (Bp - B, IN))], axis=0)
    if OUTp > OUT:
        wf = jnp.concatenate([wf, jnp.broadcast_to(wf[:1], (OUTp - OUT, IN))], axis=0)
        bf = jnp.concatenate([bf, jnp.broadcast_to(bf[:1], (OUTp - OUT,))], axis=0)
    xf = jnp.pad(xf, ((0, 0), (0, INp - IN)))
    wf = jnp.pad(wf, ((0, 0), (0, INp - IN)))

    xp = xf.astype(compute_dtype)                 # (Bp, INp)
    wp = wf.T.astype(compute_dtype)               # (INp, OUTp): no in-kernel transpose
    bp = bf.reshape(1, OUTp)                      # bias stays f32

    # --- grid ordering: larger parallel extent first (v7x dual-TC friendly) ---
    if Nt > Mt:
        grid1 = (Nt, Mt, Kt)
        x_map = lambda n, m, k: (m, k)
        w_map = lambda n, m, k: (k, n)
        b_map = lambda n, m, k: (0, n)
        y_map = lambda n, m, k: (m, n)
        p_map = lambda n, m, k: (m, n)
    else:
        grid1 = (Mt, Nt, Kt)
        x_map = lambda m, n, k: (m, k)
        w_map = lambda m, n, k: (k, n)
        b_map = lambda m, n, k: (0, n)
        y_map = lambda m, n, k: (m, n)
        p_map = lambda m, n, k: (m, n)

    # ---- Pass 1: tiled matmul + bias + per-tile max ----
    y_pad, pmax = pl.pallas_call(
        _matmul_max_kernel,
        out_shape=(
            jax.ShapeDtypeStruct((Bp, OUTp), jnp.float32),
            jax.ShapeDtypeStruct((Mt * 8, Nt * 128), jnp.float32),
        ),
        grid=grid1,
        in_specs=[
            pl.BlockSpec((tm, tk), x_map),        # x  (bf16)
            pl.BlockSpec((tk, tn), w_map),        # Wt (bf16, IN x OUT)
            pl.BlockSpec((1, tn), b_map),         # bias (f32)
        ],
        out_specs=(
            pl.BlockSpec((tm, tn), y_map),        # y_orig (f32)
            pl.BlockSpec((8, 128), p_map),        # per-tile max
        ),
        compiler_params=pltpu.CompilerParams(
            dimension_semantics=("parallel", "parallel", "arbitrary")),
        cost_estimate=pl.CostEstimate(
            flops=2 * Bp * INp * OUTp,
            transcendentals=0,
            bytes_accessed=(xp.size * xp.dtype.itemsize
                            + wp.size * wp.dtype.itemsize
                            + 4 * Bp * OUTp)),
    )(xp, wp, bp)

    # Combine the tiny per-tile maxes -> global scalar threshold.
    threshold = jnp.reshape(jnp.max(pmax) * 0.5, (1, 1)).astype(jnp.float32)

    # --- Pass-2 tiles decoupled from pass 1: widen the lane dim up to 1024 so
    #     the streaming elementwise pass runs near the HBM roofline. ---
    fn = 1
    for f in range(max(1, 1024 // tn), 0, -1):
        if Nt % f == 0:
            fn = f
            break
    tm2, tn2 = tm, tn * fn
    Mt2, Nt2 = Mt, Nt // fn

    # Row chunk: ~8K elements per live array (<= ~40 live vregs, no spill),
    # always a divisor of tm2 (tm2 is a multiple of 8).
    chunk = 8
    for c in (64, 32, 16, 8):
        if tm2 % c == 0 and c * tn2 <= 8192:
            chunk = c
            break
    unroll2 = (tm2 // chunk) <= 32

    if Nt2 > Mt2:
        grid2 = (Nt2, Mt2)
        y2_map = lambda n, m: (m, n)
    else:
        grid2 = (Mt2, Nt2)
        y2_map = lambda m, n: (m, n)

    # ---- Pass 2: fully parallel spiking gate ----
    y_gated = pl.pallas_call(
        _make_spike_gate_kernel(n_steps=10, chunk=chunk, unroll=unroll2),
        out_shape=jax.ShapeDtypeStruct((Bp, OUTp), jnp.float32),
        grid=grid2,
        in_specs=[
            pl.BlockSpec((1, 1), lambda *_: (0, 0)),      # scalar threshold
            pl.BlockSpec((tm2, tn2), y2_map),             # y_orig
        ],
        out_specs=pl.BlockSpec((tm2, tn2), y2_map),
        input_output_aliases={1: 0},                      # reuse y_orig's HBM buffer
        compiler_params=pltpu.CompilerParams(
            dimension_semantics=("parallel", "parallel")),
        cost_estimate=pl.CostEstimate(
            flops=23 * Bp * OUTp,
            transcendentals=0,
            bytes_accessed=8 * Bp * OUTp),
    )(threshold, y_pad)

    return y_gated[:B, :OUT]


# ---------------------------------------------------------------------------
# Pure-JAX reference mirroring the PyTorch forward (matmul precision selectable
# so the check can match the kernel's bf16 MXU path exactly).
# ---------------------------------------------------------------------------
def spikenet_reference(x, w, b, compute_dtype=jnp.float32):
    y_orig = jax.lax.dot_general(
        x.astype(compute_dtype), w.astype(compute_dtype),
        dimension_numbers=(((1,), (1,)), ((), ())),
        preferred_element_type=jnp.float32) + b.astype(jnp.float32)
    threshold = jnp.max(y_orig) / 2.0
    y_out = jnp.zeros_like(y_orig)
    y_remain = jnp.zeros_like(y_orig)
    for _ in range(10):
        y = y_orig + y_remain * 0.5
        y_spike = jnp.where(y < threshold, 0.0, y)
        y_out = y_out + y_spike
        y_remain = y - y_spike
    y_out = jnp.where(y_out < 0.0, 0.0, y_out)
    y_out = jnp.where(y_out > 0.0, 1.0, y_out)
    return y_orig * y_out


if __name__ == "__main__":
    key = jax.random.PRNGKey(0)
    kx, kw, kb = jax.random.split(key, 3)

    B, IN, OUT = 2, 32, 64
    x = jax.random.normal(kx, (B, IN), dtype=jnp.float32)

    # Deterministic Linear params (PyTorch default init: U(-1/sqrt(IN), 1/sqrt(IN)))
    bound = 1.0 / (IN ** 0.5)
    w = jax.random.uniform(kw, (OUT, IN), jnp.float32, -bound, bound)
    b = jax.random.uniform(kb, (OUT,), jnp.float32, -bound, bound)

    out = jax.block_until_ready(spikenet_forward(x, w, b))   # bf16 MXU path

    # Reference with the same bf16 matmul precision (the spiking/gating math is
    # identical f32 arithmetic in both, so only the dot's rounding can differ).
    ref = spikenet_reference(x, w, b, compute_dtype=jnp.bfloat16)
    assert out.shape == (B, OUT) and out.dtype == jnp.float32
    assert jnp.allclose(out, ref, atol=1e-3, rtol=1e-3), "mismatch vs reference"

    print("KERNEL_OK")
</pallas_src>

<mosaic_0001>
module attributes {stable_mosaic.version = 11 : i64} {
  func.func @_matmul_max_kernel(%arg0: i32, %arg1: i32, %arg2: i32, %arg3: memref<8x128xbf16, #tpu.memory_space<vmem>>, %arg4: memref<128x128xbf16, #tpu.memory_space<vmem>>, %arg5: memref<1x128xf32, #tpu.memory_space<vmem>>, %arg6: memref<8x128xf32, #tpu.memory_space<vmem>>, %arg7: memref<8x128xf32, #tpu.memory_space<vmem>>) attributes {dimension_semantics = [#tpu.dimension_semantics<parallel>, #tpu.dimension_semantics<parallel>, #tpu.dimension_semantics<arbitrary>], iteration_bounds = array<i64: 1, 1, 1>, scalar_prefetch = 0 : i64, scratch_operands = 0 : i64, tpu.core_type = #tpu.core_type<tc>, window_params = [{transform_indices = @transform_0, window_bounds = array<i64: 8, 128>}, {transform_indices = @transform_1, window_bounds = array<i64: 128, 128>}, {transform_indices = @transform_2, window_bounds = array<i64: 1, 128>}, {transform_indices = @transform_3, window_bounds = array<i64: 8, 128>}, {transform_indices = @transform_4, window_bounds = array<i64: 8, 128>}]} {
    %c0_i32 = arith.constant 0 : i32
    %0 = arith.cmpi eq, %arg2, %c0_i32 : i32
    %1 = arith.extui %0 : i1 to i32
    %c0_i32_0 = arith.constant 0 : i32
    %2 = arith.cmpi ne, %1, %c0_i32_0 : i32
    scf.if %2 {
      %cst_10 = arith.constant 0.000000e+00 : f32
      %12 = vector.broadcast %cst_10 : f32 to vector<8x128xf32>
      %c0_11 = arith.constant 0 : index
      %c0_12 = arith.constant 0 : index
      %13 = vector.load %arg6[%c0_11, %c0_12] : memref<8x128xf32, #tpu.memory_space<vmem>>, vector<8x128xf32>
      tpu.vector_store %arg6[%c0_11, %c0_12], %12 {strides = array<i32>} : memref<8x128xf32, #tpu.memory_space<vmem>>, vector<8x128xf32>,
    } else {
    }
    %c0 = arith.constant 0 : index
    %c0_1 = arith.constant 0 : index
    %3 = vector.load %arg6[%c0, %c0_1] : memref<8x128xf32, #tpu.memory_space<vmem>>, vector<8x128xf32>
    %c0_2 = arith.constant 0 : index
    %c0_3 = arith.constant 0 : index
    %4 = vector.load %arg3[%c0_2, %c0_3] : memref<8x128xbf16, #tpu.memory_space<vmem>>, vector<8x128xbf16>
    %c0_4 = arith.constant 0 : index
    %c0_5 = arith.constant 0 : index
    %5 = vector.load %arg4[%c0_4, %c0_5] : memref<128x128xbf16, #tpu.memory_space<vmem>>, vector<128x128xbf16>
    %cst = arith.constant dense<0.000000e+00> : vector<8x128xf32>
    %6 = tpu.matmul %4, %5, %cst {dimension_numbers = #tpu.dot_dimension_numbers<[1], [0], [0], [1], [0, 0, 1, 1], [], []>} : vector<8x128xbf16>, vector<128x128xbf16>, vector<8x128xf32> -> vector<8x128xf32>
    %7 = arith.addf %3, %6 : vector<8x128xf32>
    %c0_6 = arith.constant 0 : index
    %c0_7 = arith.constant 0 : index
    %8 = vector.load %arg6[%c0_6, %c0_7] : memref<8x128xf32, #tpu.memory_space<vmem>>, vector<8x128xf32>
    tpu.vector_store %arg6[%c0_6, %c0_7], %7 {strides = array<i32>} : memref<8x128xf32, #tpu.memory_space<vmem>>, vector<8x128xf32>,
    %c0_i32_8 = arith.constant 0 : i32
    %9 = arith.cmpi eq, %arg2, %c0_i32_8 : i32
    %10 = arith.extui %9 : i1 to i32
    %c0_i32_9 = arith.constant 0 : i32
    %11 = arith.cmpi ne, %10, %c0_i32_9 : i32
    scf.if %11 {
      %c0_10 = arith.constant 0 : index
      %c0_11 = arith.constant 0 : index
      %12 = vector.load %arg6[%c0_10, %c0_11] : memref<8x128xf32, #tpu.memory_space<vmem>>, vector<8x128xf32>
      %c0_12 = arith.constant 0 : index
      %c0_13 = arith.constant 0 : index
      %13 = vector.load %arg5[%c0_12, %c0_13] : memref<1x128xf32, #tpu.memory_space<vmem>>, vector<1x128xf32>
      %14 = vector.broadcast %13 : vector<1x128xf32> to vector<8x128xf32>
      %15 = arith.addf %12, %14 : vector<8x128xf32>
      %c0_14 = arith.constant 0 : index
      %c0_15 = arith.constant 0 : index
      %16 = vector.load %arg6[%c0_14, %c0_15] : memref<8x128xf32, #tpu.memory_space<vmem>>, vector<8x128xf32>
      tpu.vector_store %arg6[%c0_14, %c0_15], %15 {strides = array<i32>} : memref<8x128xf32, #tpu.memory_space<vmem>>, vector<8x128xf32>,
      %17 = vector.shape_cast %15 : vector<8x128xf32> to vector<1x8x128xf32>
      %cst_16 = arith.constant dense<0xFF800000> : vector<1xf32>
      %18 = vector.multi_reduction <maximumf>, %17, %cst_16 [1, 2] : vector<1x8x128xf32> to vector<1xf32>
      %19 = vector.shape_cast %18 : vector<1xf32> to vector<1x1x1xf32>
      %20 = vector.extract %19[0, 0, 0] : f32 from vector<1x1x1xf32>
      %21 = vector.broadcast %20 : f32 to vector<8x128xf32>
      %c0_17 = arith.constant 0 : index
      %c0_18 = arith.constant 0 : index
      %22 = vector.load %arg7[%c0_17, %c0_18] : memref<8x128xf32, #tpu.memory_space<vmem>>, vector<8x128xf32>
      tpu.vector_store %arg7[%c0_17, %c0_18], %21 {strides = array<i32>} : memref<8x128xf32, #tpu.memory_space<vmem>>, vector<8x128xf32>,
    } else {
    }
    return
  }
  func.func @transform_0(%arg0: i32, %arg1: i32, %arg2: i32) -> (i32, i32) {
    %c0_i32 = arith.constant 0 : i32
    return %arg0, %arg2 : i32, i32
  }
  func.func @transform_1(%arg0: i32, %arg1: i32, %arg2: i32) -> (i32, i32) {
    %c0_i32 = arith.constant 0 : i32
    return %arg2, %arg1 : i32, i32
  }
  func.func @transform_2(%arg0: i32, %arg1: i32, %arg2: i32) -> (i32, i32) {
    %c0_i32 = arith.constant 0 : i32
    %c0_i32_0 = arith.constant 0 : i32
    return %c0_i32, %arg1 : i32, i32
  }
  func.func @transform_3(%arg0: i32, %arg1: i32, %arg2: i32) -> (i32, i32) {
    %c0_i32 = arith.constant 0 : i32
    return %arg0, %arg1 : i32, i32
  }
  func.func @transform_4(%arg0: i32, %arg1: i32, %arg2: i32) -> (i32, i32) {
    %c0_i32 = arith.constant 0 : i32
    return %arg0, %arg1 : i32, i32
  }
}

</mosaic_0001>

<llo_original>
// kernel: tpu_custom_call.1
$region0: #{tpu_custom_call.1}
  #allocation0 [shape = 'u32[]', space=smem, size = 0x4, offset = 0x4, fixed_abs, tag = 'smem constant byte address 0x4 - core index']
  #allocation1 [shape = 'u32[144,128]{1,0:T(1,128)}', space=vmem, size = 0x12000, scoped, tag = 'internal scratch']
  %s0 = inlined_call_operand.hbm [shape: bf16[8,128], index: 0, kind: input, shape index: {}]
  %s1 = inlined_call_operand.hbm [shape: bf16[128,128], index: 1, kind: input, shape index: {}]
  %s2 = inlined_call_operand.vmem [shape: f32[1,128], index: 2, kind: input, shape index: {}]
  %s3 = inlined_call_operand.hbm [shape: f32[8,128], index: 3, kind: output, shape index: {0}]
  %s4 = inlined_call_operand.hbm [shape: f32[8,128], index: 4, kind: output, shape index: {1}]
  %5 = xla_tuple %s3, %s4
  %s6 = sld [smem:[#allocation0]]
  $region46: #{tpu_custom_call.1} parent=0
    _
  %s8 = ssub.s32 1, %s6
  %s9 = scalar_select 0, %s8, %s6
  $region1: #{tpu_custom_call.1} parent=0
    #allocation2 [shape = 'u8[2048]{0}', space=vmem, size = 0x800, scoped, tag = 'input window, operand 0, single buffered']
    #allocation3 [shape = 's32[1]{0}', space=sflag, size = 0x4, scoped, tag = 'scoped memory for tpu_custom_call.1']
    #allocation4 [shape = 's32[1]{0}', space=sflag, size = 0x4, scoped, tag = 'scoped memory for tpu_custom_call.1']
    #allocation5 [shape = 'u8[32768]{0}', space=vmem, size = 0x8000, scoped, tag = 'input window, operand 1, single buffered']
    #allocation6 [shape = 's32[1]{0}', space=sflag, size = 0x4, scoped, tag = 'scoped memory for tpu_custom_call.1']
    #allocation7 [shape = 'u8[4096]{0}', space=vmem, size = 0x1000, scoped, tag = 'output window, operand 0, single buffered']
    #allocation8 [shape = 'u8[4096]{0}', space=vmem, size = 0x1000, scoped, tag = 'output window, operand 1, single buffered']
    #allocation9 [shape = 's32[1]{0}', space=sflag, size = 0x4, scoped, tag = 'scoped memory for tpu_custom_call.1']
    %10 = vsyncpa [#allocation3], 0
    %11 = vsyncpa [#allocation6], 0
    %12 = vsyncpa [#allocation4], 0
    %13 = vsyncpa [#allocation9], 0
    // Predicated region
    $region2: #{tpu_custom_call.1} parent=1 // pred_check
      _
    $region3: #{tpu_custom_call.1} parent=1 // pred_check_branch
      %15 = sbr.rel (0) target = $region5
    $region4: #{tpu_custom_call.1} parent=1 // pred_region
      %s17 = ssub.s32 64, 64
      %18 = vsyncadd [#allocation3], %s17
      %s20 = sshll.u32 [#allocation2], 4
      %s21 = int_to_ptr.vmem [resolvable:$true] %s20
      %23 = dma.hbm_to_vmem [thread:$0]  %s0, 64, %s21, [#allocation3]
    $region5: #{tpu_custom_call.1} parent=1 // pred_fallthru
      _
    // Predicated region
    $region6: #{tpu_custom_call.1} parent=1 // pred_check
      _
    $region7: #{tpu_custom_call.1} parent=1 // pred_check_branch
      %25 = sbr.rel (0) target = $region9
    $region8: #{tpu_custom_call.1} parent=1 // pred_region
      %s27 = ssub.s32 1024, 1024
      %28 = vsyncadd [#allocation6], %s27
      %s29 = sshll.u32 [#allocation5], 4
      %s30 = int_to_ptr.vmem [resolvable:$true] %s29
      %35 = dma.hbm_to_vmem [thread:$0]  %s1, 1024, %s30, [#allocation6], 64, 64, 4
    $region9: #{tpu_custom_call.1} parent=1 // pred_fallthru
      _
    // Predicated region
    $region10: #{tpu_custom_call.1} parent=1 // pred_check
      _
    $region11: #{tpu_custom_call.1} parent=1 // pred_check_branch
      %37 = sbr.rel (0) target = $region13
    $region12: #{tpu_custom_call.1} parent=1 // pred_region
      _
    $region13: #{tpu_custom_call.1} parent=1 // pred_fallthru
      _
    // Predicated region
    $region14: #{tpu_custom_call.1} parent=1 // pred_check
      _
    $region15: #{tpu_custom_call.1} parent=1 // pred_check_branch
      %39 = sbr.rel (0) target = $region17
    $region16: #{tpu_custom_call.1} parent=1 // pred_region
      %40 = dma.done [#allocation3], 64
    $region17: #{tpu_custom_call.1} parent=1 // pred_fallthru
      _
    // Predicated region
    $region18: #{tpu_custom_call.1} parent=1 // pred_check
      _
    $region19: #{tpu_custom_call.1} parent=1 // pred_check_branch
      %42 = sbr.rel (0) target = $region21
    $region20: #{tpu_custom_call.1} parent=1 // pred_region
      %43 = dma.done [#allocation6], 1024
    $region21: #{tpu_custom_call.1} parent=1 // pred_fallthru
      _
    %p45 = scmp.eq.s32.totalorder 0, 0
    // Predicated region
    $region22: #{tpu_custom_call.1} parent=1 // pred_check
      %p46 = pneg %p45
    $region23: #{tpu_custom_call.1} parent=1 // pred_check_branch
      %48 = sbr.rel (%p46) target = $region25
    $region24: #{tpu_custom_call.1} parent=1 // pred_region
      %49 = vst [vmem:[#allocation7] sm:$0xff] 0.0
    $region25: #{tpu_custom_call.1} parent=1 // pred_fallthru
      _
    %v50 = vld [vmem:[#allocation7] sm:$0xff]
    %v51 = vld [vmem:[#allocation2] sm:$0xf]
    %v52 = vld [vmem:[#allocation5] sm:$0xf]
    %v53 = vld [vmem:[#allocation5 + $0x4] sm:$0xf]
    %v54 = vld [vmem:[#allocation5 + $0x8] sm:$0xf]
    %v55 = vld [vmem:[#allocation5 + $0xc] sm:$0xf]
    %v56 = vld [vmem:[#allocation5 + $0x10] sm:$0xf]
    %v57 = vld [vmem:[#allocation5 + $0x14] sm:$0xf]
    %v58 = vld [vmem:[#allocation5 + $0x18] sm:$0xf]
    %v59 = vld [vmem:[#allocation5 + $0x1c] sm:$0xf]
    %v60 = vld [vmem:[#allocation5 + $0x20] sm:$0xf]
    %v61 = vld [vmem:[#allocation5 + $0x24] sm:$0xf]
    %v62 = vld [vmem:[#allocation5 + $0x28] sm:$0xf]
    %v63 = vld [vmem:[#allocation5 + $0x2c] sm:$0xf]
    %v64 = vld [vmem:[#allocation5 + $0x30] sm:$0xf]
    %v65 = vld [vmem:[#allocation5 + $0x34] sm:$0xf]
    %v66 = vld [vmem:[#allocation5 + $0x38] sm:$0xf]
    %v67 = vld [vmem:[#allocation5 + $0x3c] sm:$0xf]
    %v84 = vunpack.c.l.b16 %v52
    %v85 = vunpack.c.l.b16 %v53
    %v86 = vunpack.c.l.b16 %v54
    %v87 = vunpack.c.l.b16 %v55
    %v88 = vunpack.c.l.b16 %v56
    %v89 = vunpack.c.l.b16 %v57
    %v90 = vunpack.c.l.b16 %v58
    %v91 = vunpack.c.l.b16 %v59
    %v92 = vunpack.c.l.b16 %v60
    %v93 = vunpack.c.l.b16 %v61
    %v94 = vunpack.c.l.b16 %v62
    %v95 = vunpack.c.l.b16 %v63
    %v96 = vunpack.c.l.b16 %v64
    %v97 = vunpack.c.l.b16 %v65
    %v98 = vunpack.c.l.b16 %v66
    %v99 = vunpack.c.l.b16 %v67
    %v100 = vpack.c.b16 %v85, %v84
    %v101 = vpack.c.b16 %v87, %v86
    %v102 = vpack.c.b16 %v89, %v88
    %v103 = vpack.c.b16 %v91, %v90
    %v104 = vpack.c.b16 %v93, %v92
    %v105 = vpack.c.b16 %v95, %v94
    %v106 = vpack.c.b16 %v97, %v96
    %v107 = vpack.c.b16 %v99, %v98
    %116 = vmatprep.subr.bf16.mxu0 0
    %117 = vmatpush1.bf16.msra.mxu0 %v107
    %118 = vmatprep.subr.bf16.mxu0 0
    %119 = vmatpush1.bf16.msra.mxu0 %v106
    %120 = vmatprep.subr.bf16.mxu0 0
    %121 = vmatpush1.bf16.msra.mxu0 %v105
    %122 = vmatprep.subr.bf16.mxu0 0
    %123 = vmatpush1.bf16.msra.mxu0 %v104
    %124 = vmatprep.subr.bf16.mxu0 0
    %125 = vmatpush1.bf16.msra.mxu0 %v103
    %126 = vmatprep.subr.bf16.mxu0 0
    %127 = vmatpush1.bf16.msra.mxu0 %v102
    %128 = vmatprep.subr.bf16.mxu0 0
    %129 = vmatpush1.bf16.msra.mxu0 %v101
    %130 = vmatprep.subr.bf16.mxu0 0
    %131 = vmatpush1.bf16.msra.mxu0 %v100
    %132 = vmatprep.subr.bf16.mxu0 0
    %133 = vmatpush2.bf16.msra.mxu0 0
    %134 = vmatprep.subr.bf16.mxu0 0
    %135 = vmatpush2.bf16.msra.mxu0 0
    %136 = vmatprep.subr.bf16.mxu0 0
    %137 = vmatpush2.bf16.msra.mxu0 0
    %138 = vmatprep.subr.bf16.mxu0 0
    %139 = vmatpush2.bf16.msra.mxu0 0
    %140 = vmatprep.subr.bf16.mxu0 0
    %141 = vmatpush2.bf16.msra.mxu0 0
    %142 = vmatprep.subr.bf16.mxu0 0
    %143 = vmatpush2.bf16.msra.mxu0 0
    %144 = vmatprep.subr.bf16.mxu0 0
    %145 = vmatpush2.bf16.msra.mxu0 0
    %146 = vmatprep.subr.bf16.mxu0 0
    %147 = vmatpush2.bf16.msra.mxu0 0
    %148 = vmatprep.mubr.bf16.mxu0 0
    %149 = vmatmul.mubr.bf16.gmra.mxu0 %v51
    %v150 = vpop.f32.mrf.mxu0
    %v151 = vadd.f32 0.0, %v150
    %v152 = vpop.f32.mrf.mxu0
    %v153 = vpop.f32.mrf.mxu0
    %v154 = vpop.f32.mrf.mxu0
    %155 = vdwg.mxu0
    %v156 = vadd.f32 %v50, %v151
    %157 = vst [vmem:[#allocation7] sm:$0xff] %v156
    // Predicated region
    $region26: #{tpu_custom_call.1} parent=1 // pred_check
      %p158 = pneg %p45
    $region27: #{tpu_custom_call.1} parent=1 // pred_check_branch
      %160 = sbr.rel (%p158) target = $region29
    $region28: #{tpu_custom_call.1} parent=1 // pred_region
      %v161 = vld [vmem:[#allocation7] sm:$0xff]
      %v162 = vld [vmem:[%s2] sm:$0x1]
      %v164 = vlaneseq
      %v165 = vshrl.u32 %v164, 7
      %v166 = vsub.s32 0, %v165
      %v167 = vrot.slane %v162, %v166
      %v169 = vadd.f32 %v161, %v167
      %170 = vst [vmem:[#allocation7] sm:$0xff] %v169
      %171 = vmax.xlane.f32.xlu0 %v169
      %v172 = vpop.xlane.xlu0 %171
      %v173 = vrot.slane %v172, 4
      %v174 = vmax.f32 %v172, %v173
      %v175 = vrot.slane %v174, 2
      %v176 = vmax.f32 %v174, %v175
      %v177 = vrot.slane %v176, 1
      %v178 = vmax.f32 %v176, %v177
      %s179 = vtos %v178
      %v180 = vstv %s179
      %181 = vst [vmem:[#allocation8] sm:$0xff] %v180
    $region29: #{tpu_custom_call.1} parent=1 // pred_fallthru
      _
    // Predicated region
    $region30: #{tpu_custom_call.1} parent=1 // pred_check
      _
    $region31: #{tpu_custom_call.1} parent=1 // pred_check_branch
      %183 = sbr.rel (0) target = $region33
    $region32: #{tpu_custom_call.1} parent=1 // pred_region
      %s185 = ssub.s32 128, 128
      %186 = vsyncadd [#allocation4], %s185
      %s188 = sshll.u32 [#allocation7], 4
      %s189 = int_to_ptr.vmem [resolvable:$true] %s188
      %191 = dma.vmem_to_hbm [thread:$0]  %s189, 128, %s3, [#allocation4]
    $region33: #{tpu_custom_call.1} parent=1 // pred_fallthru
      _
    // Predicated region
    $region34: #{tpu_custom_call.1} parent=1 // pred_check
      _
    $region35: #{tpu_custom_call.1} parent=1 // pred_check_branch
      %193 = sbr.rel (0) target = $region37
    $region36: #{tpu_custom_call.1} parent=1 // pred_region
      %s195 = ssub.s32 128, 128
      %196 = vsyncadd [#allocation9], %s195
      %s198 = sshll.u32 [#allocation8], 4
      %s199 = int_to_ptr.vmem [resolvable:$true] %s198
      %201 = dma.vmem_to_hbm [thread:$0]  %s199, 128, %s4, [#allocation9]
    $region37: #{tpu_custom_call.1} parent=1 // pred_fallthru
      _
    // Predicated region
    $region38: #{tpu_custom_call.1} parent=1 // pred_check
      _
    $region39: #{tpu_custom_call.1} parent=1 // pred_check_branch
      %203 = sbr.rel (0) target = $region41
    $region40: #{tpu_custom_call.1} parent=1 // pred_region
      %204 = dma.done [#allocation4], 128
    $region41: #{tpu_custom_call.1} parent=1 // pred_fallthru
      _
    // Predicated region
    $region42: #{tpu_custom_call.1} parent=1 // pred_check
      _
    $region43: #{tpu_custom_call.1} parent=1 // pred_check_branch
      %206 = sbr.rel (0) target = $region45
    $region44: #{tpu_custom_call.1} parent=1 // pred_region
      %207 = dma.done [#allocation9], 128
    $region45: #{tpu_custom_call.1} parent=1 // pred_fallthru
      _
    %208 = vsyncpa [#allocation3], 1
    %209 = vsyncpa [#allocation6], 1
    %210 = vsyncpa [#allocation4], 1
    %211 = vsyncpa [#allocation9], 1

</llo_original>
